<compile_context>
chip_gen: v5e
topology: v5e:2x2
jax: 0.10.0
libtpu: 0.0.40
codegen_flags: <defaults>
</compile_context>

<pallas_src>
import math

import jax
import jax.numpy as jnp
from jax.experimental import pallas as pl
from jax.experimental.pallas import tpu as pltpu

# Per-buffer block byte budget.  ~4 MiB keeps the ~0.35us per-grid-step fixed
# overhead at ~10% of DMA time even at v7x's ~3.2 TB/s per-TC HBM, while
# double-buffered (x in + out) tiles (~16 MiB) stay well inside the explicit
# VMEM limit on every generation.
_BLOCK_BYTE_BUDGET = 4 << 20
_VMEM_LIMIT_BYTES = 48 << 20
# Below this total size, a plain XLA broadcast-multiply beats the fixed
# pallas_call launch + pipeline prologue/epilogue cost.
_FAST_PATH_BYTES = 256 << 10


def _drop_path_kernel(x_ref, scale_ref, o_ref):
    # x_ref / o_ref: (TB, TILE_N) tile of the flattened (B, N) input / output.
    # scale_ref:     (TB, 1) f32 per-sample scale: 0.0 (dropped) or 1/keep_prob.
    # Multiply in f32 (scale dtype) and cast the product; the kernel is
    # bandwidth-bound so the cast is free and preserves precision for bf16 x.
    o_ref[...] = (x_ref[...] * scale_ref[...]).astype(o_ref.dtype)


def _rdown(v, m):
    return (v // m) * m


def _rup(v, m):
    return ((v + m - 1) // m) * m


def _pick_tiles(B, N, itemsize, target_bytes=_BLOCK_BYTE_BUDGET):
    """Byte-budgeted (TB, TILE_N) satisfying the (8, 128) block-shape rule."""
    tb0 = B if B <= 8 else 8

    if N <= 128 or tb0 * N * itemsize <= target_bytes:
        # Whole rows fit the budget (or the last dim is too small to tile):
        # take the full lane extent (always a legal block dim) and spend the
        # remaining byte budget on batch rows instead.
        tile_n = N
        if B <= 8:
            tb = B
        else:
            rows = max(8, target_bytes // max(1, N * itemsize))
            tb = B if rows >= B else max(8, _rdown(rows, 8))
    else:
        # Large last dim: keep TB small, put the budget into a long,
        # 128-aligned, lane-dense TILE_N (contiguous HBM runs, unmasked vst).
        tb = tb0
        budget_elems = max(128, target_bytes // max(1, tb * itemsize))
        tile_n = max(128, min(_rdown(budget_elems, 128), _rdown(N, 128)))

    # v7x has 2 TensorCores, each with its own HBM path: if a mid-size tensor
    # collapsed to a single block, split it so both cores get work.
    # No-op cost on v5e/v6e (single TC).
    if (B * N * itemsize >= (1 << 20)
            and pl.cdiv(B, tb) * pl.cdiv(N, tile_n) == 1):
        if N >= 256:
            tile_n = max(128, _rup((N + 1) // 2, 128))
        elif B >= 16:
            tb = max(8, _rup((B + 1) // 2, 8))
    return tb, tile_n


def drop_path(x, drop_prob=None, training=False, seed=0, force_pallas=False):
    """JAX/Pallas equivalent of the torch drop_path / DropPath.forward."""
    if drop_prob is None or drop_prob == 0.0 or not training:
        return x  # identity, exactly as in the PyTorch module (eval / p == 0)
    if drop_prob >= 1.0:
        # keep_prob == 0 would give 0 * inf = NaN in the torch reference;
        # define it cleanly as "everything dropped".
        return jnp.zeros_like(x)

    keep_prob = 1.0 - float(drop_prob)
    B = x.shape[0]
    N = math.prod(x.shape[1:]) if x.ndim > 1 else 1
    x2 = x.reshape(B, N)  # lane-dense 2D layout

    # Per-sample Bernoulli(keep_prob), same recipe as torch: floor(keep_prob + U).
    # Tiny (B,)-sized draw -> cheap wrapper-side compute; kernel only multiplies.
    u = jax.random.uniform(jax.random.PRNGKey(seed), (B,), dtype=jnp.float32)
    scale = (jnp.floor(keep_prob + u) * (1.0 / keep_prob)).reshape(B, 1)  # f32

    itemsize = jnp.dtype(x.dtype).itemsize
    if not force_pallas and B * N * itemsize < _FAST_PATH_BYTES:
        # Tiny tensors: XLA's fused broadcast-multiply is strictly faster than
        # the fixed pallas_call overhead.
        return (x2 * scale).astype(x.dtype).reshape(x.shape)

    TB, TILE_N = _pick_tiles(B, N, itemsize)
    # cdiv grid: ragged edge blocks are padded/masked by Pallas; safe for a
    # pure elementwise op and removes all divisibility requirements on B / N.
    grid = (pl.cdiv(B, TB), pl.cdiv(N, TILE_N))

    out = pl.pallas_call(
        _drop_path_kernel,
        out_shape=jax.ShapeDtypeStruct((B, N), x.dtype),
        grid_spec=pltpu.PrefetchScalarGridSpec(
            num_scalar_prefetch=0,
            grid=grid,
            in_specs=[
                pl.BlockSpec((TB, TILE_N), lambda b, n: (b, n)),
                # Constant across the inner (N) axis -> fetched once per
                # batch-row group, not re-DMA'd every inner step.
                pl.BlockSpec((TB, 1), lambda b, n: (b, 0)),
            ],
            out_specs=pl.BlockSpec((TB, TILE_N), lambda b, n: (b, n)),
        ),
        compiler_params=pltpu.CompilerParams(
            dimension_semantics=("parallel", "parallel"),
            vmem_limit_bytes=_VMEM_LIMIT_BYTES,
        ),
    )(x2, scale)

    return out.reshape(x.shape)


class DropPath:
    """Drop paths (Stochastic Depth) per sample — DropPath module port."""

    def __init__(self, drop_prob=None):
        self.drop_prob = drop_prob
        self.training = True

    def __call__(self, x, seed=0):
        return drop_path(x, self.drop_prob, self.training, seed=seed)


if __name__ == "__main__":
    key = jax.random.PRNGKey(0)
    B, S, D = 2, 8, 32  # small shapes consistent with a retnet block
    x = jax.random.normal(key, (B, S, D), dtype=jnp.float32)

    drop_prob = 0.25
    keep_prob = 1.0 - drop_prob

    # Eval-mode path: identity (matches torch semantics, no kernel needed).
    mod_eval = DropPath(drop_prob=drop_prob)
    mod_eval.training = False
    assert jnp.allclose(mod_eval(x), x), "eval path must be identity"

    # Training path: per-sample stochastic depth, forced through the Pallas
    # kernel at the small test shape (the auto path would take the XLA fast path).
    y = jax.block_until_ready(
        drop_path(x, drop_prob, training=True, seed=0, force_pallas=True))

    u_ref = jax.random.uniform(jax.random.PRNGKey(0), (B,), dtype=jnp.float32)
    expected = x * (jnp.floor(keep_prob + u_ref) / keep_prob).reshape(B, 1, 1)
    assert jnp.allclose(y, expected, rtol=1e-6, atol=1e-6), "mismatch vs reference"

    # Each sample is either entirely dropped or kept & scaled by 1/keep_prob.
    for b in range(B):
        dropped = bool(jnp.allclose(y[b], 0.0, atol=1e-6))
        kept = bool(jnp.allclose(y[b], x[b] / keep_prob, rtol=1e-5, atol=1e-5))
        assert dropped or kept, f"sample {b}: neither dropped nor correctly scaled"

    # Larger, awkwardly-shaped input (N = 33*100 = 3300, not a multiple of 128)
    # exercising the byte-budgeted cdiv / ragged-edge tiling via the auto path.
    B2, S2, D2 = 64, 33, 100
    x_big = jax.random.normal(jax.random.PRNGKey(1), (B2, S2, D2), dtype=jnp.float32)
    y_big = jax.block_until_ready(drop_path(x_big, drop_prob, training=True, seed=3))
    u_big = jax.random.uniform(jax.random.PRNGKey(3), (B2,), dtype=jnp.float32)
    expected_big = x_big * (jnp.floor(keep_prob + u_big) / keep_prob).reshape(B2, 1, 1)
    assert jnp.allclose(y_big, expected_big, rtol=1e-6, atol=1e-6), "large-shape mismatch"

    print("KERNEL_OK")
</pallas_src>

<mosaic_0001>
module attributes {stable_mosaic.version = 11 : i64} {
  func.func @_drop_path_kernel(%arg0: i32, %arg1: i32, %arg2: memref<2x256xf32, #tpu.memory_space<vmem>>, %arg3: memref<2x1xf32, #tpu.memory_space<vmem>>, %arg4: memref<2x256xf32, #tpu.memory_space<vmem>>) attributes {dimension_semantics = [#tpu.dimension_semantics<parallel>, #tpu.dimension_semantics<parallel>], iteration_bounds = array<i64: 1, 1>, scalar_prefetch = 0 : i64, scratch_operands = 0 : i64, tpu.core_type = #tpu.core_type<tc>, window_params = [{transform_indices = @transform_0, window_bounds = array<i64: 2, 256>}, {transform_indices = @transform_1, window_bounds = array<i64: 2, 1>}, {transform_indices = @transform_2, window_bounds = array<i64: 2, 256>}]} {
    %c0 = arith.constant 0 : index
    %c0_0 = arith.constant 0 : index
    %0 = vector.load %arg2[%c0, %c0_0] : memref<2x256xf32, #tpu.memory_space<vmem>>, vector<2x256xf32>
    %c0_1 = arith.constant 0 : index
    %c0_2 = arith.constant 0 : index
    %1 = vector.load %arg3[%c0_1, %c0_2] : memref<2x1xf32, #tpu.memory_space<vmem>>, vector<2x1xf32>
    %2 = vector.broadcast %1 : vector<2x1xf32> to vector<2x256xf32>
    %3 = arith.mulf %0, %2 : vector<2x256xf32>
    %c0_3 = arith.constant 0 : index
    %c0_4 = arith.constant 0 : index
    %4 = vector.load %arg4[%c0_3, %c0_4] : memref<2x256xf32, #tpu.memory_space<vmem>>, vector<2x256xf32>
    tpu.vector_store %arg4[%c0_3, %c0_4], %3 {strides = array<i32>} : memref<2x256xf32, #tpu.memory_space<vmem>>, vector<2x256xf32>,
    return
  }
  func.func @transform_0(%arg0: i32, %arg1: i32) -> (i32, i32) {
    %c0_i32 = arith.constant 0 : i32
    return %arg0, %arg1 : i32, i32
  }
  func.func @transform_1(%arg0: i32, %arg1: i32) -> (i32, i32) {
    %c0_i32 = arith.constant 0 : i32
    %c0_i32_0 = arith.constant 0 : i32
    return %arg0, %c0_i32 : i32, i32
  }
  func.func @transform_2(%arg0: i32, %arg1: i32) -> (i32, i32) {
    %c0_i32 = arith.constant 0 : i32
    return %arg0, %arg1 : i32, i32
  }
}

</mosaic_0001>

<llo_original>
// kernel: tpu_custom_call.1
$region0: #{tpu_custom_call.1}
  #allocation0 [shape = 'u32[]', space=smem, size = 0x4, offset = 0x4, fixed_abs, tag = 'smem constant byte address 0x4 - core index']
  #allocation1 [shape = 'u32[72,128]{1,0:T(1,128)}', space=vmem, size = 0x9000, scoped, tag = 'internal scratch']
  %s0 = inlined_call_operand.hbm [shape: f32[2,256], index: 0, kind: input, shape index: {}]
  %s1 = inlined_call_operand.vmem [shape: f32[2,1], index: 1, kind: input, shape index: {}]
  %s2 = inlined_call_operand.hbm [shape: f32[2,256], index: 2, kind: output, shape index: {}]
  %s3 = sld [smem:[#allocation0]]
  $region22: #{tpu_custom_call.1} parent=0
    _
  %s5 = ssub.s32 1, %s3
  %s6 = scalar_select 0, %s5, %s3
  $region1: #{tpu_custom_call.1} parent=0
    #allocation2 [shape = 'u8[2048]{0}', space=vmem, size = 0x800, scoped, tag = 'input window, operand 0, single buffered']
    #allocation3 [shape = 's32[1]{0}', space=sflag, size = 0x4, scoped, tag = 'scoped memory for tpu_custom_call.1']
    #allocation4 [shape = 's32[1]{0}', space=sflag, size = 0x4, scoped, tag = 'scoped memory for tpu_custom_call.1']
    #allocation5 [shape = 'u8[2048]{0}', space=vmem, size = 0x800, scoped, tag = 'output window, operand 0, single buffered']
    %7 = vsyncpa [#allocation3], 0
    %8 = vsyncpa [#allocation4], 0
    // Predicated region
    $region2: #{tpu_custom_call.1} parent=1 // pred_check
      _
    $region3: #{tpu_custom_call.1} parent=1 // pred_check_branch
      %10 = sbr.rel (0) target = $region5
    $region4: #{tpu_custom_call.1} parent=1 // pred_region
      %12 = vsyncadd [#allocation3], 0
      %s14 = sshll.u32 %s0, 4
      %s15 = int_to_ptr.hbm [resolvable:$true] %s14
      %s16 = sshll.u32 [#allocation2], 4
      %s17 = int_to_ptr.vmem [resolvable:$true] %s16
      %19 = dma.hbm_to_vmem [thread:$0]  %s15, 64, %s17, [#allocation3]
    $region5: #{tpu_custom_call.1} parent=1 // pred_fallthru
      _
    // Predicated region
    $region6: #{tpu_custom_call.1} parent=1 // pred_check
      _
    $region7: #{tpu_custom_call.1} parent=1 // pred_check_branch
      %21 = sbr.rel (0) target = $region9
    $region8: #{tpu_custom_call.1} parent=1 // pred_region
      _
    $region9: #{tpu_custom_call.1} parent=1 // pred_fallthru
      _
    // Predicated region
    $region10: #{tpu_custom_call.1} parent=1 // pred_check
      _
    $region11: #{tpu_custom_call.1} parent=1 // pred_check_branch
      %23 = sbr.rel (0) target = $region13
    $region12: #{tpu_custom_call.1} parent=1 // pred_region
      %25 = dma.done [#allocation3], 64
    $region13: #{tpu_custom_call.1} parent=1 // pred_fallthru
      _
    %v26 = vld [vmem:[#allocation2] sm:$0xf]
    %v27 = vld [vmem:[%s1] sm:$0x3]
    %29 = vset.pattern.permute.xlu0 0
    %30 = vperm.xlu0 %29, %v27
    %v31 = vpop.permute.xlu0 %30
    %v33 = vunpack.c.l.s4 269488144
    %v34 = vunpack.c.0.s8 %v33
    %v35 = vperm.slane %v31, %v34
    %v37 = vmul.f32 %v26, %v35
    %38 = vst [vmem:[#allocation5] sm:$0xf] %v37
    // Predicated region
    $region14: #{tpu_custom_call.1} parent=1 // pred_check
      _
    $region15: #{tpu_custom_call.1} parent=1 // pred_check_branch
      %40 = sbr.rel (0) target = $region17
    $region16: #{tpu_custom_call.1} parent=1 // pred_region
      %42 = vsyncadd [#allocation4], 0
      %s44 = sshll.u32 [#allocation5], 4
      %s45 = int_to_ptr.vmem [resolvable:$true] %s44
      %s46 = sshll.u32 %s2, 4
      %s47 = int_to_ptr.hbm [resolvable:$true] %s46
      %49 = dma.vmem_to_hbm [thread:$0]  %s45, 64, %s47, [#allocation4]
    $region17: #{tpu_custom_call.1} parent=1 // pred_fallthru
      _
    // Predicated region
    $region18: #{tpu_custom_call.1} parent=1 // pred_check
      _
    $region19: #{tpu_custom_call.1} parent=1 // pred_check_branch
      %51 = sbr.rel (0) target = $region21
    $region20: #{tpu_custom_call.1} parent=1 // pred_region
      %53 = dma.done [#allocation4], 64
    $region21: #{tpu_custom_call.1} parent=1 // pred_fallthru
      _
    %54 = vsyncpa [#allocation3], 1
    %55 = vsyncpa [#allocation4], 1

</llo_original>
